<compile_context>
chip_gen: v7x
topology: tpu7x:2x2x1
jax: 0.10.0
libtpu: 0.0.40
codegen_flags: <defaults>
</compile_context>

<pallas_src>
import functools
from typing import NamedTuple

import jax
import jax.numpy as jnp
from jax.experimental import pallas as pl
from jax.experimental.pallas import tpu as pltpu


_LANE = 128
_MAX_TILE_B = 4096          # ~15 MiB working set per grid step at these dims
_PALLAS_MIN_BATCH = 512     # below this the fused-XLA fallback wins


# ----------------------------- Pallas kernel -------------------------------

def _policy_mlp_kernel(x_ref, w1_ref, b1_ref, w2_ref, b2_ref, w3_ref, b3_ref,
                       out_ref):
    """Fused 3-layer MLP: Linear->ReLU->Linear->ReLU->Linear->Tanh.

    bf16 operands into the MXU, f32 accumulation, f32 bias/ReLU/tanh.
    The output block is a full 128-lane slab (w3/b3 pre-padded), so the
    final store is lane-dense (no masked partial stores).
    """
    x = x_ref[...].astype(jnp.bfloat16)                      # [TB, d_in]

    h1 = jnp.dot(x, w1_ref[...], preferred_element_type=jnp.float32)
    h1 = h1 + b1_ref[...]                                    # [TB, 256] f32
    h1 = jnp.maximum(h1, 0.0).astype(jnp.bfloat16)

    h2 = jnp.dot(h1, w2_ref[...], preferred_element_type=jnp.float32)
    h2 = h2 + b2_ref[...]                                    # [TB, 128] f32
    h2 = jnp.maximum(h2, 0.0).astype(jnp.bfloat16)

    h3 = jnp.dot(h2, w3_ref[...], preferred_element_type=jnp.float32)
    h3 = h3 + b3_ref[...]                                    # [TB, 128] f32
    out_ref[...] = jnp.tanh(h3).astype(out_ref.dtype)        # bf16, lane-dense


def _round_up(n, m):
    return ((n + m - 1) // m) * m


def _choose_tile_b(batch):
    """Largest tile <= _MAX_TILE_B that still yields >= 2 grid steps when the
    batch allows it (so the 'parallel' batch axis can use both v7x TCs)."""
    tile = _round_up(max(1, -(-batch // 2)), 8)   # ceil(B/2), sublane-aligned
    return max(8, min(_MAX_TILE_B, tile))


@functools.partial(jax.jit, static_argnames=("a_dim",))
def _pallas_mlp(x, w1, b1, w2, b2, w3, b3, *, a_dim):
    """Batch-tiled fused MLP; weights stay VMEM-resident across the grid."""
    batch, d_in = x.shape
    h1_dim = w1.shape[1]
    h2_dim = w2.shape[1]
    out_cols = w3.shape[1]            # lane-padded (128), a_dim sliced later

    tile_b = _choose_tile_b(batch)
    grid = (pl.cdiv(batch, tile_b),)  # ragged last block handled by Pallas

    # Explicit scoped-VMEM budget derived from the tile so the same tile size
    # compiles on v5e (16 MiB scoped default) and stays well under v7x's
    # 64 MiB physical VMEM.
    # TODO(synk): derive _MAX_TILE_B per generation via pltpu.get_tpu_info().
    per_row_bytes = (
        2 * d_in * 4                  # x f32 tile, double-buffered
        + d_in * 2                    # x bf16 cast
        + h1_dim * (4 + 2)            # h1 f32 + bf16
        + h2_dim * (4 + 2)            # h2 f32 + bf16
        + out_cols * 4                # h3 f32
        + 2 * out_cols * 2)           # out bf16 tile, double-buffered
    weight_bytes = ((d_in * h1_dim + h1_dim * h2_dim + h2_dim * out_cols) * 2
                    + (h1_dim + h2_dim + out_cols) * 4)
    need = tile_b * per_row_bytes + weight_bytes
    vmem_limit = min(48 << 20, max(16 << 20, int(1.5 * need) + (2 << 20)))

    flops = 2 * batch * (d_in * h1_dim + h1_dim * h2_dim + h2_dim * out_cols)
    bytes_accessed = (batch * d_in * 4          # x (f32 in HBM)
                      + batch * out_cols * 2    # bf16 output slab
                      + weight_bytes)

    x_spec = pl.BlockSpec((tile_b, d_in), lambda i: (i, 0))
    out_spec = pl.BlockSpec((tile_b, out_cols), lambda i: (i, 0))
    # Whole-array, grid-invariant specs -> weights/biases resident in VMEM.
    w1_spec = pl.BlockSpec((d_in, h1_dim), lambda i: (0, 0))
    b1_spec = pl.BlockSpec((1, h1_dim), lambda i: (0, 0))
    w2_spec = pl.BlockSpec((h1_dim, h2_dim), lambda i: (0, 0))
    b2_spec = pl.BlockSpec((1, h2_dim), lambda i: (0, 0))
    w3_spec = pl.BlockSpec((h2_dim, out_cols), lambda i: (0, 0))
    b3_spec = pl.BlockSpec((1, out_cols), lambda i: (0, 0))

    out = pl.pallas_call(
        _policy_mlp_kernel,
        out_shape=jax.ShapeDtypeStruct((batch, out_cols), jnp.bfloat16),
        grid=grid,
        in_specs=[x_spec, w1_spec, b1_spec, w2_spec, b2_spec, w3_spec, b3_spec],
        out_specs=out_spec,
        compiler_params=pltpu.CompilerParams(
            dimension_semantics=("parallel",),     # shard batch on v7x 2xTC
            vmem_limit_bytes=vmem_limit),
        cost_estimate=pl.CostEstimate(
            flops=flops,
            transcendentals=batch * out_cols,      # tanh
            bytes_accessed=bytes_accessed),
    )(x, w1, b1, w2, b2, w3, b3)

    # TODO(synk): the "pack 16 batch rows per lane row" output layout would
    # shrink writeback bytes further; the zero-pad-to-128 variant is used here
    # because it needs no in-kernel relayout.
    return out[:, :a_dim].astype(jnp.float32)


@jax.jit
def _xla_mlp(x, w1, b1, w2, b2, w3, b3):
    """Small-batch fallback: three tiny matmuls, fully fused by XLA."""
    h = jnp.maximum(jnp.dot(x, w1.astype(jnp.float32)) + b1, 0.0)
    h = jnp.maximum(jnp.dot(h, w2.astype(jnp.float32)) + b2, 0.0)
    return jnp.tanh(jnp.dot(h, w3.astype(jnp.float32)) + b3)


def policy_mlp(x, params, *, force_pallas=False):
    a_dim = params["cov_mat"].shape[0]
    if force_pallas or x.shape[0] >= _PALLAS_MIN_BATCH:
        return _pallas_mlp(x, params["w1"], params["b1"],
                           params["w2"], params["b2"],
                           params["w3"], params["b3"], a_dim=a_dim)
    out = _xla_mlp(x, params["w1"], params["b1"],
                   params["w2"], params["b2"],
                   params["w3"], params["b3"])
    return out[:, :a_dim]


# ----------------------- GaussianPolicy (JAX side) -------------------------

class GaussianDist(NamedTuple):
    """JAX stand-in for torch.distributions.MultivariateNormal(loc, cov_mat)."""
    loc: jax.Array       # [B, a_dim]
    cov_mat: jax.Array   # [a_dim, a_dim]


def _linear_init(key, fan_in, fan_out):
    """PyTorch nn.Linear default init: U(-1/sqrt(fan_in), 1/sqrt(fan_in))."""
    kw, kb = jax.random.split(key)
    bound = 1.0 / jnp.sqrt(jnp.float32(fan_in))
    # stored as [in, out] (pre-transposed) so the kernel does x @ W + b
    w = jax.random.uniform(kw, (fan_in, fan_out), jnp.float32, -bound, bound)
    b = jax.random.uniform(kb, (1, fan_out), jnp.float32, -bound, bound)
    return w, b


def make_gaussian_policy_params(key, o_dim, g_dim, a_dim, action_var):
    k1, k2, k3 = jax.random.split(key, 3)
    d_in = o_dim + g_dim
    w1, b1 = _linear_init(k1, d_in, 256)
    w2, b2 = _linear_init(k2, 256, 128)
    w3, b3 = _linear_init(k3, 128, a_dim)

    # Lane-dense output layer: pad to a full 128-lane width with zero columns
    # (tanh(0) = 0, sliced off in the wrapper).
    out_cols = max(_LANE, _round_up(a_dim, _LANE))
    w3 = jnp.pad(w3, ((0, 0), (0, out_cols - a_dim)))
    b3 = jnp.pad(b3, ((0, 0), (0, out_cols - a_dim)))

    # Weights stored in bf16 once (native MXU input dtype; no per-call casts).
    return dict(
        w1=w1.astype(jnp.bfloat16), b1=b1,
        w2=w2.astype(jnp.bfloat16), b2=b2,
        w3=w3.astype(jnp.bfloat16), b3=b3,
        cov_mat=jnp.diag(jnp.full((a_dim,), action_var, dtype=jnp.float32)))


def gaussian_policy_forward(params, o_g_input, *, force_pallas=False):
    a_mean = policy_mlp(o_g_input, params, force_pallas=force_pallas)
    # TODO(synk): torch returns a MultivariateNormal object (lazy sampler /
    # log_prob); here we return its defining (loc, covariance_matrix) pair.
    return GaussianDist(loc=a_mean, cov_mat=params["cov_mat"])


# --------------------------------- main ------------------------------------

if __name__ == "__main__":
    key = jax.random.PRNGKey(0)
    kp, kx, kb = jax.random.split(key, 3)

    # Small shapes consistent with the module: o_dim=12, g_dim=4, a_dim=8.
    o_dim, g_dim, a_dim = 12, 4, 8
    batch = 8
    action_var = 0.05

    params = make_gaussian_policy_params(kp, o_dim, g_dim, a_dim, action_var)
    o_g_input = jax.random.normal(kx, (batch, o_dim + g_dim), jnp.float32)

    # Pure-JAX f32 reference (uses the same bf16 weights upcast to f32;
    # tolerance covers the kernel's bf16 activation/output path).
    def ref_mlp(x, p):
        ad = p["cov_mat"].shape[0]
        h = jnp.maximum(x @ p["w1"].astype(jnp.float32) + p["b1"], 0.0)
        h = jnp.maximum(h @ p["w2"].astype(jnp.float32) + p["b2"], 0.0)
        return jnp.tanh(h @ p["w3"].astype(jnp.float32) + p["b3"])[:, :ad]

    # 1) Pallas kernel at the module-native tiny batch (forced path).
    dist = gaussian_policy_forward(params, o_g_input, force_pallas=True)
    jax.block_until_ready(dist.loc)
    jax.block_until_ready(dist.cov_mat)
    assert dist.loc.shape == (batch, a_dim)
    assert dist.cov_mat.shape == (a_dim, a_dim)
    ref_small = ref_mlp(o_g_input, params)
    assert jnp.allclose(dist.loc, ref_small, atol=3e-2, rtol=3e-2), (
        float(jnp.max(jnp.abs(dist.loc - ref_small))))

    # 2) Default dispatch at tiny batch -> fused-XLA fallback, same numbers.
    dist_xla = gaussian_policy_forward(params, o_g_input)
    jax.block_until_ready(dist_xla.loc)
    assert jnp.allclose(dist_xla.loc, ref_small, atol=3e-2, rtol=3e-2)

    # 3) Large ragged batch (not a multiple of the tile) -> Pallas path,
    #    exercises the cdiv grid + masked last block + >=2 grid steps.
    big_x = jax.random.normal(kb, (1000, o_dim + g_dim), jnp.float32)
    big = gaussian_policy_forward(params, big_x)   # B >= 512 -> Pallas
    jax.block_until_ready(big.loc)
    assert big.loc.shape == (1000, a_dim)
    ref_big = ref_mlp(big_x, params)
    assert jnp.allclose(big.loc, ref_big, atol=3e-2, rtol=3e-2), (
        float(jnp.max(jnp.abs(big.loc - ref_big))))

    print("KERNEL_OK")
</pallas_src>

<mosaic_0001>
module attributes {stable_mosaic.version = 11 : i64} {
  func.func @_policy_mlp_kernel(%arg0: i32, %arg1: memref<8x16xf32, #tpu.memory_space<vmem>>, %arg2: memref<16x256xbf16, #tpu.memory_space<vmem>>, %arg3: memref<1x256xf32, #tpu.memory_space<vmem>>, %arg4: memref<256x128xbf16, #tpu.memory_space<vmem>>, %arg5: memref<1x128xf32, #tpu.memory_space<vmem>>, %arg6: memref<128x128xbf16, #tpu.memory_space<vmem>>, %arg7: memref<1x128xf32, #tpu.memory_space<vmem>>, %arg8: memref<8x128xbf16, #tpu.memory_space<vmem>>) attributes {dimension_semantics = [#tpu.dimension_semantics<parallel>], iteration_bounds = array<i64: 1>, scalar_prefetch = 0 : i64, scratch_operands = 0 : i64, tpu.core_type = #tpu.core_type<tc>, window_params = [{transform_indices = @transform_0, window_bounds = array<i64: 8, 16>}, {pipeline_mode = #tpu.pipeline_mode<synchronous>, transform_indices = @transform_1, window_bounds = array<i64: 16, 256>}, {pipeline_mode = #tpu.pipeline_mode<synchronous>, transform_indices = @transform_2, window_bounds = array<i64: 1, 256>}, {pipeline_mode = #tpu.pipeline_mode<synchronous>, transform_indices = @transform_3, window_bounds = array<i64: 256, 128>}, {pipeline_mode = #tpu.pipeline_mode<synchronous>, transform_indices = @transform_4, window_bounds = array<i64: 1, 128>}, {pipeline_mode = #tpu.pipeline_mode<synchronous>, transform_indices = @transform_5, window_bounds = array<i64: 128, 128>}, {pipeline_mode = #tpu.pipeline_mode<synchronous>, transform_indices = @transform_6, window_bounds = array<i64: 1, 128>}, {transform_indices = @transform_7, window_bounds = array<i64: 8, 128>}]} {
    %c0 = arith.constant 0 : index
    %c0_0 = arith.constant 0 : index
    %0 = vector.load %arg1[%c0, %c0_0] : memref<8x16xf32, #tpu.memory_space<vmem>>, vector<8x16xf32>
    %1 = arith.truncf %0 : vector<8x16xf32> to vector<8x16xbf16>
    %c0_1 = arith.constant 0 : index
    %c0_2 = arith.constant 0 : index
    %2 = vector.load %arg2[%c0_1, %c0_2] : memref<16x256xbf16, #tpu.memory_space<vmem>>, vector<16x256xbf16>
    %cst = arith.constant dense<0.000000e+00> : vector<8x256xf32>
    %3 = tpu.matmul %1, %2, %cst {dimension_numbers = #tpu.dot_dimension_numbers<[1], [0], [0], [1], [0, 0, 1, 1], [], []>} : vector<8x16xbf16>, vector<16x256xbf16>, vector<8x256xf32> -> vector<8x256xf32>
    %c0_3 = arith.constant 0 : index
    %c0_4 = arith.constant 0 : index
    %4 = vector.load %arg3[%c0_3, %c0_4] : memref<1x256xf32, #tpu.memory_space<vmem>>, vector<1x256xf32>
    %5 = vector.broadcast %4 : vector<1x256xf32> to vector<8x256xf32>
    %6 = arith.addf %3, %5 : vector<8x256xf32>
    %cst_5 = arith.constant 0.000000e+00 : f32
    %7 = vector.broadcast %cst_5 : f32 to vector<8x256xf32>
    %8 = arith.maximumf %6, %7 : vector<8x256xf32>
    %9 = arith.truncf %8 : vector<8x256xf32> to vector<8x256xbf16>
    %c0_6 = arith.constant 0 : index
    %c0_7 = arith.constant 0 : index
    %10 = vector.load %arg4[%c0_6, %c0_7] : memref<256x128xbf16, #tpu.memory_space<vmem>>, vector<256x128xbf16>
    %cst_8 = arith.constant dense<0.000000e+00> : vector<8x128xf32>
    %11 = tpu.matmul %9, %10, %cst_8 {dimension_numbers = #tpu.dot_dimension_numbers<[1], [0], [0], [1], [0, 0, 1, 1], [], []>} : vector<8x256xbf16>, vector<256x128xbf16>, vector<8x128xf32> -> vector<8x128xf32>
    %c0_9 = arith.constant 0 : index
    %c0_10 = arith.constant 0 : index
    %12 = vector.load %arg5[%c0_9, %c0_10] : memref<1x128xf32, #tpu.memory_space<vmem>>, vector<1x128xf32>
    %13 = vector.broadcast %12 : vector<1x128xf32> to vector<8x128xf32>
    %14 = arith.addf %11, %13 : vector<8x128xf32>
    %cst_11 = arith.constant 0.000000e+00 : f32
    %15 = vector.broadcast %cst_11 : f32 to vector<8x128xf32>
    %16 = arith.maximumf %14, %15 : vector<8x128xf32>
    %17 = arith.truncf %16 : vector<8x128xf32> to vector<8x128xbf16>
    %c0_12 = arith.constant 0 : index
    %c0_13 = arith.constant 0 : index
    %18 = vector.load %arg6[%c0_12, %c0_13] : memref<128x128xbf16, #tpu.memory_space<vmem>>, vector<128x128xbf16>
    %cst_14 = arith.constant dense<0.000000e+00> : vector<8x128xf32>
    %19 = tpu.matmul %17, %18, %cst_14 {dimension_numbers = #tpu.dot_dimension_numbers<[1], [0], [0], [1], [0, 0, 1, 1], [], []>} : vector<8x128xbf16>, vector<128x128xbf16>, vector<8x128xf32> -> vector<8x128xf32>
    %c0_15 = arith.constant 0 : index
    %c0_16 = arith.constant 0 : index
    %20 = vector.load %arg7[%c0_15, %c0_16] : memref<1x128xf32, #tpu.memory_space<vmem>>, vector<1x128xf32>
    %21 = vector.broadcast %20 : vector<1x128xf32> to vector<8x128xf32>
    %22 = arith.addf %19, %21 : vector<8x128xf32>
    %23 = math.tanh %22 : vector<8x128xf32>
    %24 = arith.truncf %23 : vector<8x128xf32> to vector<8x128xbf16>
    %c0_17 = arith.constant 0 : index
    %c0_18 = arith.constant 0 : index
    %25 = vector.load %arg8[%c0_17, %c0_18] : memref<8x128xbf16, #tpu.memory_space<vmem>>, vector<8x128xbf16>
    tpu.vector_store %arg8[%c0_17, %c0_18], %24 {strides = array<i32>} : memref<8x128xbf16, #tpu.memory_space<vmem>>, vector<8x128xbf16>,
    return
  }
  func.func @transform_0(%arg0: i32) -> (i32, i32) {
    %c0_i32 = arith.constant 0 : i32
    %c0_i32_0 = arith.constant 0 : i32
    return %arg0, %c0_i32 : i32, i32
  }
  func.func @transform_1(%arg0: i32) -> (i32, i32) {
    %c0_i32 = arith.constant 0 : i32
    %c0_i32_0 = arith.constant 0 : i32
    %c0_i32_1 = arith.constant 0 : i32
    return %c0_i32, %c0_i32_0 : i32, i32
  }
  func.func @transform_2(%arg0: i32) -> (i32, i32) {
    %c0_i32 = arith.constant 0 : i32
    %c0_i32_0 = arith.constant 0 : i32
    %c0_i32_1 = arith.constant 0 : i32
    return %c0_i32, %c0_i32_0 : i32, i32
  }
  func.func @transform_3(%arg0: i32) -> (i32, i32) {
    %c0_i32 = arith.constant 0 : i32
    %c0_i32_0 = arith.constant 0 : i32
    %c0_i32_1 = arith.constant 0 : i32
    return %c0_i32, %c0_i32_0 : i32, i32
  }
  func.func @transform_4(%arg0: i32) -> (i32, i32) {
    %c0_i32 = arith.constant 0 : i32
    %c0_i32_0 = arith.constant 0 : i32
    %c0_i32_1 = arith.constant 0 : i32
    return %c0_i32, %c0_i32_0 : i32, i32
  }
  func.func @transform_5(%arg0: i32) -> (i32, i32) {
    %c0_i32 = arith.constant 0 : i32
    %c0_i32_0 = arith.constant 0 : i32
    %c0_i32_1 = arith.constant 0 : i32
    return %c0_i32, %c0_i32_0 : i32, i32
  }
  func.func @transform_6(%arg0: i32) -> (i32, i32) {
    %c0_i32 = arith.constant 0 : i32
    %c0_i32_0 = arith.constant 0 : i32
    %c0_i32_1 = arith.constant 0 : i32
    return %c0_i32, %c0_i32_0 : i32, i32
  }
  func.func @transform_7(%arg0: i32) -> (i32, i32) {
    %c0_i32 = arith.constant 0 : i32
    %c0_i32_0 = arith.constant 0 : i32
    return %arg0, %c0_i32 : i32, i32
  }
}

</mosaic_0001>

<llo_original>
// kernel: _pallas_mlp.1
$region0: #{_pallas_mlp.1}
  #allocation0 [shape = 'u32[]', space=smem, size = 0x4, offset = 0x4, fixed_abs, tag = 'smem constant byte address 0x4 - core index']
  #allocation1 [shape = 'u32[144,128]{1,0:T(1,128)}', space=vmem, size = 0x12000, scoped, tag = 'internal scratch']
  %s0 = inlined_call_operand.hbm [shape: f32[8,16], index: 0, kind: input, shape index: {}]
  %s1 = inlined_call_operand.hbm [shape: bf16[16,256], index: 1, kind: input, shape index: {}]
  %s2 = inlined_call_operand.vmem [shape: f32[1,256], index: 2, kind: input, shape index: {}]
  %s3 = inlined_call_operand.hbm [shape: bf16[256,128], index: 3, kind: input, shape index: {}]
  %s4 = inlined_call_operand.vmem [shape: f32[1,128], index: 4, kind: input, shape index: {}]
  %s5 = inlined_call_operand.hbm [shape: bf16[128,128], index: 5, kind: input, shape index: {}]
  %s6 = inlined_call_operand.vmem [shape: f32[1,128], index: 6, kind: input, shape index: {}]
  %s7 = inlined_call_operand.vmem [shape: bf16[8,128], index: 7, kind: output, shape index: {}]
  %s8 = sld [smem:[#allocation0]]
  $region54: #{_pallas_mlp.1} parent=0
    _
  %s10 = ssub.s32 1, %s8
  %s11 = scalar_select 0, %s10, %s8
  $region1: #{_pallas_mlp.1} parent=0
    #allocation2 [shape = 'u8[4096]{0}', space=vmem, size = 0x1000, scoped, tag = 'input window, operand 0, single buffered']
    #allocation3 [shape = 's32[1]{0}', space=sflag, size = 0x4, scoped, tag = 'scoped memory for _pallas_mlp.1']
    #allocation4 [shape = 'u8[8192]{0}', space=vmem, size = 0x2000, scoped, tag = 'input window, operand 1, single buffered']
    #allocation5 [shape = 's32[1]{0}', space=sflag, size = 0x4, scoped, tag = 'scoped memory for _pallas_mlp.1']
    #allocation6 [shape = 'u8[65536]{0}', space=vmem, size = 0x10000, scoped, tag = 'input window, operand 3, single buffered']
    #allocation7 [shape = 'u8[32768]{0}', space=vmem, size = 0x8000, scoped, tag = 'input window, operand 5, single buffered']
    #allocation8 [shape = 's32[1]{0}', space=sflag, size = 0x4, scoped, tag = 'scoped memory for _pallas_mlp.1']
    %12 = vsyncpa [#allocation3], 0
    %13 = vsyncpa [#allocation5], 0
    %14 = vsyncpa [#allocation8], 0
    // Predicated region
    $region2: #{_pallas_mlp.1} parent=1 // pred_check
      _
    $region3: #{_pallas_mlp.1} parent=1 // pred_check_branch
      %16 = sbr.rel (0) target = $region5
    $region4: #{_pallas_mlp.1} parent=1 // pred_region
      %s18 = ssub.s32 128, 128
      %19 = vsyncadd [#allocation3], %s18
      %s21 = sshll.u32 [#allocation2], 4
      %s22 = int_to_ptr.vmem [resolvable:$true] %s21
      %24 = dma.hbm_to_vmem [thread:$0]  %s0, 128, %s22, [#allocation3]
    $region5: #{_pallas_mlp.1} parent=1 // pred_fallthru
      _
    // Predicated region
    $region6: #{_pallas_mlp.1} parent=1 // pred_check
      _
    $region7: #{_pallas_mlp.1} parent=1 // pred_check_branch
      %26 = sbr.rel (0) target = $region9
    $region8: #{_pallas_mlp.1} parent=1 // pred_region
      %s28 = ssub.s32 256, 256
      %29 = vsyncadd [#allocation5], %s28
      %s30 = sshll.u32 [#allocation4], 4
      %s31 = int_to_ptr.vmem [resolvable:$true] %s30
      %36 = dma.hbm_to_vmem [thread:$0]  %s1, 256, %s31, [#allocation5], 128, 128, 8
    $region9: #{_pallas_mlp.1} parent=1 // pred_fallthru
      _
    // Predicated region
    $region10: #{_pallas_mlp.1} parent=1 // pred_check
      _
    $region11: #{_pallas_mlp.1} parent=1 // pred_check_branch
      %38 = sbr.rel (0) target = $region13
    $region12: #{_pallas_mlp.1} parent=1 // pred_region
      _
    $region13: #{_pallas_mlp.1} parent=1 // pred_fallthru
      _
    // Predicated region
    $region14: #{_pallas_mlp.1} parent=1 // pred_check
      _
    $region15: #{_pallas_mlp.1} parent=1 // pred_check_branch
      %40 = sbr.rel (0) target = $region17
    $region16: #{_pallas_mlp.1} parent=1 // pred_region
      %s42 = ssub.s32 2048, 2048
      %43 = vsyncadd [#allocation5], %s42
      %s44 = sshll.u32 [#allocation6], 4
      %s45 = int_to_ptr.vmem [resolvable:$true] %s44
      %50 = dma.hbm_to_vmem [thread:$0]  %s3, 2048, %s45, [#allocation5], 64, 64, 4
    $region17: #{_pallas_mlp.1} parent=1 // pred_fallthru
      _
    // Predicated region
    $region18: #{_pallas_mlp.1} parent=1 // pred_check
      _
    $region19: #{_pallas_mlp.1} parent=1 // pred_check_branch
      %52 = sbr.rel (0) target = $region21
    $region20: #{_pallas_mlp.1} parent=1 // pred_region
      _
    $region21: #{_pallas_mlp.1} parent=1 // pred_fallthru
      _
    // Predicated region
    $region22: #{_pallas_mlp.1} parent=1 // pred_check
      _
    $region23: #{_pallas_mlp.1} parent=1 // pred_check_branch
      %54 = sbr.rel (0) target = $region25
    $region24: #{_pallas_mlp.1} parent=1 // pred_region
      %s56 = ssub.s32 1024, 1024
      %57 = vsyncadd [#allocation8], %s56
      %s58 = sshll.u32 [#allocation7], 4
      %s59 = int_to_ptr.vmem [resolvable:$true] %s58
      %64 = dma.hbm_to_vmem [thread:$0]  %s5, 1024, %s59, [#allocation8], 64, 64, 4
    $region25: #{_pallas_mlp.1} parent=1 // pred_fallthru
      _
    // Predicated region
    $region26: #{_pallas_mlp.1} parent=1 // pred_check
      _
    $region27: #{_pallas_mlp.1} parent=1 // pred_check_branch
      %66 = sbr.rel (0) target = $region29
    $region28: #{_pallas_mlp.1} parent=1 // pred_region
      _
    $region29: #{_pallas_mlp.1} parent=1 // pred_fallthru
      _
    // Predicated region
    $region30: #{_pallas_mlp.1} parent=1 // pred_check
      _
    $region31: #{_pallas_mlp.1} parent=1 // pred_check_branch
      %68 = sbr.rel (0) target = $region33
    $region32: #{_pallas_mlp.1} parent=1 // pred_region
      %69 = dma.done [#allocation3], 128
    $region33: #{_pallas_mlp.1} parent=1 // pred_fallthru
      _
    // Predicated region
    $region34: #{_pallas_mlp.1} parent=1 // pred_check
      _
    $region35: #{_pallas_mlp.1} parent=1 // pred_check_branch
      %71 = sbr.rel (0) target = $region37
    $region36: #{_pallas_mlp.1} parent=1 // pred_region
      %72 = dma.done [#allocation5], 256
    $region37: #{_pallas_mlp.1} parent=1 // pred_fallthru
      _
    // Predicated region
    $region38: #{_pallas_mlp.1} parent=1 // pred_check
      _
    $region39: #{_pallas_mlp.1} parent=1 // pred_check_branch
      %74 = sbr.rel (0) target = $region41
    $region40: #{_pallas_mlp.1} parent=1 // pred_region
      %75 = dma.done [#allocation5], 2048
    $region41: #{_pallas_mlp.1} parent=1 // pred_fallthru
      _
    // Predicated region
    $region42: #{_pallas_mlp.1} parent=1 // pred_check
      _
    $region43: #{_pallas_mlp.1} parent=1 // pred_check_branch
      %77 = sbr.rel (0) target = $region45
    $region44: #{_pallas_mlp.1} parent=1 // pred_region
      %78 = dma.done [#allocation8], 1024
    $region45: #{_pallas_mlp.1} parent=1 // pred_fallthru
      _
    %v80 = vld [vmem:[#allocation2] sm:$0xff]
    %v81 = vpack.c.bf16 %v80, %v80
    %v82 = vld [vmem:[#allocation4] sm:$0xff]
    %v83 = vld [vmem:[#allocation4 + $0x8] sm:$0xff]
    %v84 = vld [vmem:[%s2] sm:$0x3]
    %v86 = vlaneseq
    %v87 = vshrl.u32 %v86, 7
    %v88 = vsub.s32 0, %v87
    %v89 = vrot.slane %v84, %v88
    %v90 = vlaneseq
    %v91 = vshrl.u32 %v90, 7
    %v92 = vsub.s32 1, %v91
    %v93 = vrot.slane %v84, %v92
    %v98 = vunpack.c.l.b16 %v82
    %v99 = vunpack.c.h.b16 %v82
    %v100 = vunpack.c.l.b16 %v83
    %v101 = vunpack.c.h.b16 %v83
    %v102 = vpack.c.b16 %v100, %v98
    %v103 = vpack.c.b16 %v101, %v99
    %vm106 = vcmask 130048
    %v108 = vsel %vm106, %v81, 0
    %110 = vmatprep.subr.bf16.mxu0 %v103
    %111 = vmatpush1.bf16.msra.mxu0 %v102
    %112 = vmatprep.subr.bf16.mxu0 0
    %113 = vmatpush1.bf16.msra.mxu0 0
    %114 = vmatprep.subr.bf16.mxu0 0
    %115 = vmatpush1.bf16.msra.mxu0 0
    %116 = vmatprep.subr.bf16.mxu0 0
    %117 = vmatpush1.bf16.msra.mxu0 0
    %118 = vmatprep.subr.bf16.mxu0 0
    %119 = vmatpush1.bf16.msra.mxu0 0
    %120 = vmatprep.subr.bf16.mxu0 0
    %121 = vmatpush1.bf16.msra.mxu0 0
    %122 = vmatprep.subr.bf16.mxu0 0
    %123 = vmatpush1.bf16.msra.mxu0 0
    %124 = vmatprep.subr.bf16.mxu0 0
    %125 = vmatpush1.bf16.msra.mxu0 0
    %126 = vmatprep.subr.bf16.mxu0 0
    %127 = vmatpush1.bf16.msra.mxu0 0
    %128 = vmatprep.subr.bf16.mxu0 0
    %129 = vmatpush1.bf16.msra.mxu0 0
    %130 = vmatprep.subr.bf16.mxu0 0
    %131 = vmatpush1.bf16.msra.mxu0 0
    %132 = vmatprep.subr.bf16.mxu0 0
    %133 = vmatpush1.bf16.msra.mxu0 0
    %134 = vmatprep.subr.bf16.mxu0 0
    %135 = vmatpush1.bf16.msra.mxu0 0
    %136 = vmatprep.subr.bf16.mxu0 0
    %137 = vmatpush1.bf16.msra.mxu0 0
    %138 = vmatprep.subr.bf16.mxu0 0
    %139 = vmatpush1.bf16.msra.mxu0 0
    %140 = vmatprep.subr.bf16.mxu0 0
    %141 = vmatpush1.bf16.msra.mxu0 0
    %142 = vmatprep.mubr.bf16.mxu0 0
    %143 = vmatmul.mubr.bf16.gmra.mrb[0].mxu0 %v108
    %v144 = vpop.f32.mrb[0].mxu0
    %v145 = vadd.f32 %v89, %v144
    %v146 = vpop.f32.mrb[0].mxu0
    %v147 = vadd.f32 %v93, %v146
    %v148 = vpop.f32.mrb[0].mxu0
    %v149 = vpop.f32.mrb[0].mxu0
    %150 = vdwg.mxu0
    %v151 = vmax.f32 %v145, 0.0
    %v152 = vmax.f32 %v147, 0.0
    %v153 = vpack.c.bf16 %v151, %v151
    %v154 = vpack.c.bf16 %v152, %v152
    %v155 = vld [vmem:[#allocation6] sm:$0xf]
    %v156 = vld [vmem:[#allocation6 + $0x4] sm:$0xf]
    %v157 = vld [vmem:[#allocation6 + $0x8] sm:$0xf]
    %v158 = vld [vmem:[#allocation6 + $0xc] sm:$0xf]
    %v159 = vld [vmem:[#allocation6 + $0x10] sm:$0xf]
    %v160 = vld [vmem:[#allocation6 + $0x14] sm:$0xf]
    %v161 = vld [vmem:[#allocation6 + $0x18] sm:$0xf]
    %v162 = vld [vmem:[#allocation6 + $0x1c] sm:$0xf]
    %v163 = vld [vmem:[#allocation6 + $0x20] sm:$0xf]
    %v164 = vld [vmem:[#allocation6 + $0x24] sm:$0xf]
    %v165 = vld [vmem:[#allocation6 + $0x28] sm:$0xf]
    %v166 = vld [vmem:[#allocation6 + $0x2c] sm:$0xf]
    %v167 = vld [vmem:[#allocation6 + $0x30] sm:$0xf]
    %v168 = vld [vmem:[#allocation6 + $0x34] sm:$0xf]
    %v169 = vld [vmem:[#allocation6 + $0x38] sm:$0xf]
    %v170 = vld [vmem:[#allocation6 + $0x3c] sm:$0xf]
    %v171 = vld [vmem:[#allocation6 + $0x40] sm:$0xf]
    %v172 = vld [vmem:[#allocation6 + $0x44] sm:$0xf]
    %v173 = vld [vmem:[#allocation6 + $0x48] sm:$0xf]
    %v174 = vld [vmem:[#allocation6 + $0x4c] sm:$0xf]
    %v175 = vld [vmem:[#allocation6 + $0x50] sm:$0xf]
    %v176 = vld [vmem:[#allocation6 + $0x54] sm:$0xf]
    %v177 = vld [vmem:[#allocation6 + $0x58] sm:$0xf]
    %v178 = vld [vmem:[#allocation6 + $0x5c] sm:$0xf]
    %v179 = vld [vmem:[#allocation6 + $0x60] sm:$0xf]
    %v180 = vld [vmem:[#allocation6 + $0x64] sm:$0xf]
    %v181 = vld [vmem:[#allocation6 + $0x68] sm:$0xf]
    %v182 = vld [vmem:[#allocation6 + $0x6c] sm:$0xf]
    %v183 = vld [vmem:[#allocation6 + $0x70] sm:$0xf]
    %v184 = vld [vmem:[#allocation6 + $0x74] sm:$0xf]
    %v185 = vld [vmem:[#allocation6 + $0x78] sm:$0xf]
    %v186 = vld [vmem:[#allocation6 + $0x7c] sm:$0xf]
    %v187 = vld [vmem:[%s4] sm:$0x1]
    %v189 = vlaneseq
    %v190 = vshrl.u32 %v189, 7
    %v191 = vsub.s32 0, %v190
    %v192 = vrot.slane %v187, %v191
    %v226 = vunpack.c.l.b16 %v155
    %v227 = vunpack.c.l.b16 %v156
    %v228 = vunpack.c.l.b16 %v157
    %v229 = vunpack.c.l.b16 %v158
    %v230 = vunpack.c.l.b16 %v159
    %v231 = vunpack.c.l.b16 %v160
    %v232 = vunpack.c.l.b16 %v161
    %v233 = vunpack.c.l.b16 %v162
    %v234 = vunpack.c.l.b16 %v163
    %v235 = vunpack.c.l.b16 %v164
    %v236 = vunpack.c.l.b16 %v165
    %v237 = vunpack.c.l.b16 %v166
    %v238 = vunpack.c.l.b16 %v167
    %v239 = vunpack.c.l.b16 %v168
    %v240 = vunpack.c.l.b16 %v169
    %v241 = vunpack.c.l.b16 %v170
    %v242 = vunpack.c.l.b16 %v171
    %v243 = vunpack.c.l.b16 %v172
    %v244 = vunpack.c.l.b16 %v173
    %v245 = vunpack.c.l.b16 %v174
    %v246 = vunpack.c.l.b16 %v175
    %v247 = vunpack.c.l.b16 %v176
    %v248 = vunpack.c.l.b16 %v177
    %v249 = vunpack.c.l.b16 %v178
    %v250 = vunpack.c.l.b16 %v179
    %v251 = vunpack.c.l.b16 %v180
    %v252 = vunpack.c.l.b16 %v181
    %v253 = vunpack.c.l.b16 %v182
    %v254 = vunpack.c.l.b16 %v183
    %v255 = vunpack.c.l.b16 %v184
    %v256 = vunpack.c.l.b16 %v185
    %v257 = vunpack.c.l.b16 %v186
    %v258 = vpack.c.b16 %v227, %v226
    %v259 = vpack.c.b16 %v229, %v228
    %v260 = vpack.c.b16 %v231, %v230
    %v261 = vpack.c.b16 %v233, %v232
    %v262 = vpack.c.b16 %v235, %v234
    %v263 = vpack.c.b16 %v237, %v236
    %v264 = vpack.c.b16 %v239, %v238
    %v265 = vpack.c.b16 %v241, %v240
    %v266 = vpack.c.b16 %v243, %v242
    %v267 = vpack.c.b16 %v245, %v244
    %v268 = vpack.c.b16 %v247, %v246
    %v269 = vpack.c.b16 %v249, %v248
    %v270 = vpack.c.b16 %v251, %v250
    %v271 = vpack.c.b16 %v253, %v252
    %v272 = vpack.c.b16 %v255, %v254
    %v273 = vpack.c.b16 %v257, %v256
    %290 = vmatprep.subr.bf16.mxu0 0
    %291 = vmatpush1.bf16.msra.mxu0 %v258
    %292 = vmatprep.subr.bf16.mxu0 0
    %293 = vmatpush1.bf16.msra.mxu0 %v259
    %294 = vmatprep.subr.bf16.mxu0 0
    %295 = vmatpush1.bf16.msra.mxu0 %v260
    %296 = vmatprep.subr.bf16.mxu0 0
    %297 = vmatpush1.bf16.msra.mxu0 %v261
    %298 = vmatprep.subr.bf16.mxu0 0
    %299 = vmatpush1.bf16.msra.mxu0 %v262
    %300 = vmatprep.subr.bf16.mxu0 0
    %301 = vmatpush1.bf16.msra.mxu0 %v263
    %302 = vmatprep.subr.bf16.mxu0 0
    %303 = vmatpush1.bf16.msra.mxu0 %v264
    %304 = vmatprep.subr.bf16.mxu0 0
    %305 = vmatpush1.bf16.msra.mxu0 %v265
    %306 = vmatprep.subr.bf16.mxu0 0
    %307 = vmatpush1.bf16.msra.mxu0 %v266
    %308 = vmatprep.subr.bf16.mxu0 0
    %309 = vmatpush1.bf16.msra.mxu0 %v267
    %310 = vmatprep.subr.bf16.mxu0 0
    %311 = vmatpush1.bf16.msra.mxu0 %v268
    %312 = vmatprep.subr.bf16.mxu0 0
    %313 = vmatpush1.bf16.msra.mxu0 %v269
    %314 = vmatprep.subr.bf16.mxu0 0
    %315 = vmatpush1.bf16.msra.mxu0 %v270
    %316 = vmatprep.subr.bf16.mxu0 0
    %317 = vmatpush1.bf16.msra.mxu0 %v271
    %318 = vmatprep.subr.bf16.mxu0 0
    %319 = vmatpush1.bf16.msra.mxu0 %v272
    %320 = vmatprep.subr.bf16.mxu0 0
    %321 = vmatpush1.bf16.msra.mxu0 %v273
    %322 = vmatprep.mubr.bf16.mxu0 %v154
    %323 = vmatmul.mubr.bf16.gmra.mrb[0].mxu0 %v153
    %v324 = vpop.f32.mrb[0].mxu0
    %v325 = vadd.f32 %v192, %v324
    %v326 = vpop.f32.mrb[0].mxu0
    %v327 = vpop.f32.mrb[0].mxu0
    %v328 = vpop.f32.mrb[0].mxu0
    %329 = vdwg.mxu0
    %v330 = vmax.f32 %v325, 0.0
    %v331 = vpack.c.bf16 %v330, %v330
    %v332 = vld [vmem:[#allocation7] sm:$0xf]
    %v333 = vld [vmem:[#allocation7 + $0x4] sm:$0xf]
    %v334 = vld [vmem:[#allocation7 + $0x8] sm:$0xf]
    %v335 = vld [vmem:[#allocation7 + $0xc] sm:$0xf]
    %v336 = vld [vmem:[#allocation7 + $0x10] sm:$0xf]
    %v337 = vld [vmem:[#allocation7 + $0x14] sm:$0xf]
    %v338 = vld [vmem:[#allocation7 + $0x18] sm:$0xf]
    %v339 = vld [vmem:[#allocation7 + $0x1c] sm:$0xf]
    %v340 = vld [vmem:[#allocation7 + $0x20] sm:$0xf]
    %v341 = vld [vmem:[#allocation7 + $0x24] sm:$0xf]
    %v342 = vld [vmem:[#allocation7 + $0x28] sm:$0xf]
    %v343 = vld [vmem:[#allocation7 + $0x2c] sm:$0xf]
    %v344 = vld [vmem:[#allocation7 + $0x30] sm:$0xf]
    %v345 = vld [vmem:[#allocation7 + $0x34] sm:$0xf]
    %v346 = vld [vmem:[#allocation7 + $0x38] sm:$0xf]
    %v347 = vld [vmem:[#allocation7 + $0x3c] sm:$0xf]
    %v348 = vld [vmem:[%s6] sm:$0x1]
    %v350 = vlaneseq
    %v351 = vshrl.u32 %v350, 7
    %v352 = vsub.s32 0, %v351
    %v353 = vrot.slane %v348, %v352
    %v371 = vunpack.c.l.b16 %v332
    %v372 = vunpack.c.l.b16 %v333
    %v373 = vunpack.c.l.b16 %v334
    %v374 = vunpack.c.l.b16 %v335
    %v375 = vunpack.c.l.b16 %v336
    %v376 = vunpack.c.l.b16 %v337
    %v377 = vunpack.c.l.b16 %v338
    %v378 = vunpack.c.l.b16 %v339
    %v379 = vunpack.c.l.b16 %v340
    %v380 = vunpack.c.l.b16 %v341
    %v381 = vunpack.c.l.b16 %v342
    %v382 = vunpack.c.l.b16 %v343
    %v383 = vunpack.c.l.b16 %v344
    %v384 = vunpack.c.l.b16 %v345
    %v385 = vunpack.c.l.b16 %v346
    %v386 = vunpack.c.l.b16 %v347
    %v387 = vpack.c.b16 %v372, %v371
    %v388 = vpack.c.b16 %v374, %v373
    %v389 = vpack.c.b16 %v376, %v375
    %v390 = vpack.c.b16 %v378, %v377
    %v391 = vpack.c.b16 %v380, %v379
    %v392 = vpack.c.b16 %v382, %v381
    %v393 = vpack.c.b16 %v384, %v383
    %v394 = vpack.c.b16 %v386, %v385
    %403 = vmatprep.subr.bf16.mxu0 0
    %404 = vmatpush1.bf16.msra.mxu0 %v387
    %405 = vmatprep.subr.bf16.mxu0 0
    %406 = vmatpush1.bf16.msra.mxu0 %v388
    %407 = vmatprep.subr.bf16.mxu0 0
    %408 = vmatpush1.bf16.msra.mxu0 %v389
    %409 = vmatprep.subr.bf16.mxu0 0
    %410 = vmatpush1.bf16.msra.mxu0 %v390
    %411 = vmatprep.subr.bf16.mxu0 0
    %412 = vmatpush1.bf16.msra.mxu0 %v391
    %413 = vmatprep.subr.bf16.mxu0 0
    %414 = vmatpush1.bf16.msra.mxu0 %v392
    %415 = vmatprep.subr.bf16.mxu0 0
    %416 = vmatpush1.bf16.msra.mxu0 %v393
    %417 = vmatprep.subr.bf16.mxu0 0
    %418 = vmatpush1.bf16.msra.mxu0 %v394
    %419 = vmatprep.subr.bf16.mxu0 0
    %420 = vmatpush1.bf16.msra.mxu0 0
    %421 = vmatprep.subr.bf16.mxu0 0
    %422 = vmatpush1.bf16.msra.mxu0 0
    %423 = vmatprep.subr.bf16.mxu0 0
    %424 = vmatpush1.bf16.msra.mxu0 0
    %425 = vmatprep.subr.bf16.mxu0 0
    %426 = vmatpush1.bf16.msra.mxu0 0
    %427 = vmatprep.subr.bf16.mxu0 0
    %428 = vmatpush1.bf16.msra.mxu0 0
    %429 = vmatprep.subr.bf16.mxu0 0
    %430 = vmatpush1.bf16.msra.mxu0 0
    %431 = vmatprep.subr.bf16.mxu0 0
    %432 = vmatpush1.bf16.msra.mxu0 0
    %433 = vmatprep.subr.bf16.mxu0 0
    %434 = vmatpush1.bf16.msra.mxu0 0
    %435 = vmatprep.mubr.bf16.mxu0 0
    %436 = vmatmul.mubr.bf16.gmra.mrb[0].mxu0 %v331
    %v437 = vpop.f32.mrb[0].mxu0
    %v438 = vadd.f32 %v353, %v437
    %v439 = vpop.f32.mrb[0].mxu0
    %v440 = vpop.f32.mrb[0].mxu0
    %v441 = vpop.f32.mrb[0].mxu0
    %442 = vdwg.mxu0
    %v443 = vtanh.pop %v438
    %v444 = vpack.c.bf16 %v443, %v443
    %445 = vst [vmem:[%s7] sm:$0xf] %v444
    // Predicated region
    $region46: #{_pallas_mlp.1} parent=1 // pred_check
      _
    $region47: #{_pallas_mlp.1} parent=1 // pred_check_branch
      %447 = sbr.rel (0) target = $region49
    $region48: #{_pallas_mlp.1} parent=1 // pred_region
      _
    $region49: #{_pallas_mlp.1} parent=1 // pred_fallthru
      _
    // Predicated region
    $region50: #{_pallas_mlp.1} parent=1 // pred_check
      _
    $region51: #{_pallas_mlp.1} parent=1 // pred_check_branch
      %449 = sbr.rel (0) target = $region53
    $region52: #{_pallas_mlp.1} parent=1 // pred_region
      _
    $region53: #{_pallas_mlp.1} parent=1 // pred_fallthru
      _
    %450 = vsyncpa [#allocation3], 1
    %451 = vsyncpa [#allocation5], 1
    %452 = vsyncpa [#allocation8], 1

</llo_original>
